<compile_context>
chip_gen: v7x
topology: tpu7x:2x2x1
jax: 0.10.0
libtpu: 0.0.40
codegen_flags: <defaults>
</compile_context>

<pallas_src>
import functools
import math

import jax
import jax.numpy as jnp
from jax.experimental import pallas as pl
from jax.experimental.pallas import tpu as pltpu


# ----------------------------------------------------------------------------
# Kernels
# ----------------------------------------------------------------------------
def _l12norm_folded_kernel(x_ref, o_ref, *, p: int, d: int):
    """Lane-folded path: block is (row_tile, 128), each aligned group of `d`
    lanes is one logical row of the original (rows, d) array."""
    x = x_ref[...]                                   # native dtype, no f32 copy
    xa = x * x if p == 2 else jnp.abs(x)
    s = xa.astype(jnp.float32)                       # accumulate in f32
    n = s.shape[-1]                                  # 128
    lane = jax.lax.broadcasted_iota(jnp.int32, s.shape, s.ndim - 1)

    # Exact all-reduce (sum) within every aligned group of `d` lanes via an
    # XOR butterfly: at step k each lane adds the value of lane ^ k.  Both
    # roll directions plus a rolled lane-id are used so the result does not
    # depend on pltpu.roll's shift-sign convention.
    k = 1
    while k < d:
        v1 = pltpu.roll(s, k, 1)
        v2 = pltpu.roll(s, n - k, 1)
        l1 = pltpu.roll(lane, k, 1)
        partner = lane ^ k                           # always in [0, n), same group
        s = s + jnp.where(l1 == partner, v1, v2)
        k *= 2

    norm = jnp.sqrt(s) if p == 2 else s
    # Exact reciprocal (approx=True would be ~2^-12 rel error); HBM-bound, so
    # the EUP/VPU cost is irrelevant either way.
    inv = pl.reciprocal(norm + 1e-8, approx=False)
    o_ref[...] = (x * inv.astype(x.dtype)).astype(o_ref.dtype)


def _l12norm_rowsum_kernel(x_ref, o_ref, *, p: int):
    """Plain path: block is (row_tile, D), reduce over the lane axis."""
    x = x_ref[...]
    xa = x * x if p == 2 else jnp.abs(x)
    s = jnp.sum(xa.astype(jnp.float32), axis=-1, keepdims=True)
    norm = jnp.sqrt(s) if p == 2 else s
    inv = pl.reciprocal(norm + 1e-8, approx=False)
    o_ref[...] = (x * inv.astype(x.dtype)).astype(o_ref.dtype)


# ----------------------------------------------------------------------------
# Tiling helpers
# ----------------------------------------------------------------------------
def _vmem_limit_bytes() -> int:
    try:
        info = pltpu.get_tpu_info()
        cap = int(getattr(info, "vmem_capacity_bytes", 0)) or (64 << 20)
    except Exception:
        cap = 64 << 20                  # conservative: v7x physical VMEM / core
    # Raise the scoped-VMEM limit above the 16-32 MiB default but keep headroom.
    return max(32 << 20, min(int(cap * 0.7), 100 << 20))


def _pick_row_tile(num_rows: int, row_bytes: int, vmem_limit: int) -> int:
    """~2 MiB per block, the whole pipelined working set (2x in + 2x out +
    f32 temps ~ 6-8 blocks) inside the scoped VMEM limit, and >=~4 grid steps
    for large inputs so v7x's two TensorCores both get work."""
    block_budget = min(2 << 20, max(256 << 10, vmem_limit // 8))
    tile = block_budget // max(1, row_bytes)
    tile = max(8, (tile // 8) * 8)                   # sublane multiple of 8
    if tile >= num_rows:
        return num_rows                              # full extent is always legal
    cap = max(8, (((num_rows + 3) // 4) // 8) * 8)   # keep >= ~4 grid steps
    return max(8, min(tile, cap))


# ----------------------------------------------------------------------------
# Wrapper
# ----------------------------------------------------------------------------
def l12_norm(x: jax.Array, p: int = 2) -> jax.Array:
    """Pallas implementation of L12Norm.forward (norm over the last dim)."""
    p = int(p)
    if p not in (1, 2):
        return x                                     # module semantics: pass-through

    orig_shape = x.shape
    D = int(orig_shape[-1])
    rows = int(math.prod(orig_shape[:-1]))
    x2 = x.reshape(rows, D)
    itemsize = jnp.dtype(x.dtype).itemsize
    vmem_limit = _vmem_limit_bytes()
    compiler_params = pltpu.CompilerParams(
        dimension_semantics=("parallel",),
        vmem_limit_bytes=vmem_limit,
    )
    cost = pl.CostEstimate(
        flops=6 * rows * D,
        transcendentals=2 * rows,
        bytes_accessed=2 * rows * D * itemsize,
    )

    # Lane-dense path for small power-of-two D (< 128): fold G = 128 // D rows
    # into the lane axis.  TODO(synk): non-power-of-two small D could use a
    # block-diagonal-ones MXU reduction for lane density; it falls back to the
    # plain path (still correct) for now.
    use_folded = (0 < D < 128) and (D & (D - 1) == 0)

    if use_folded:
        G = 128 // D
        rows_p = ((rows + G - 1) // G) * G
        if rows_p != rows:
            x2 = jnp.pad(x2, ((0, rows_p - rows), (0, 0)))   # zero rows -> 0/eps = 0
        n_rows_f = rows_p // G
        xf = x2.reshape(n_rows_f, 128)

        row_tile = _pick_row_tile(n_rows_f, 128 * itemsize, vmem_limit)
        grid = (pl.cdiv(n_rows_f, row_tile),)
        block = (row_tile, 128)
        kernel = functools.partial(_l12norm_folded_kernel, p=p, d=D)

        out_f = pl.pallas_call(
            kernel,
            out_shape=jax.ShapeDtypeStruct(xf.shape, x.dtype),
            grid_spec=pltpu.PrefetchScalarGridSpec(
                num_scalar_prefetch=0,
                grid=grid,
                in_specs=[pl.BlockSpec(block, lambda i: (i, 0))],
                out_specs=pl.BlockSpec(block, lambda i: (i, 0)),
            ),
            compiler_params=compiler_params,
            cost_estimate=cost,
        )(xf)
        out2 = out_f.reshape(rows_p, D)[:rows]
    else:
        # TODO(synk): for extremely large D (f32 D >= ~64K) add a second
        # "arbitrary" grid axis over D with a VMEM accumulator so one block
        # never exceeds VMEM.
        lanes_padded = ((D + 127) // 128) * 128      # real VMEM footprint per row
        row_tile = _pick_row_tile(rows, lanes_padded * itemsize, vmem_limit)
        grid = (pl.cdiv(rows, row_tile),)
        block = (row_tile, D)
        kernel = functools.partial(_l12norm_rowsum_kernel, p=p)

        out2 = pl.pallas_call(
            kernel,
            out_shape=jax.ShapeDtypeStruct((rows, D), x.dtype),
            grid_spec=pltpu.PrefetchScalarGridSpec(
                num_scalar_prefetch=0,
                grid=grid,
                in_specs=[pl.BlockSpec(block, lambda i: (i, 0))],
                out_specs=pl.BlockSpec(block, lambda i: (i, 0)),
            ),
            compiler_params=compiler_params,
            cost_estimate=cost,
        )(x2)

    return out2.reshape(orig_shape)


# ----------------------------------------------------------------------------
# Reference + test
# ----------------------------------------------------------------------------
def _reference(x, p):
    if p not in (1, 2):
        return x
    xf = x.astype(jnp.float32)
    if p == 2:
        n = jnp.sqrt(jnp.sum(xf * xf, axis=-1, keepdims=True))
    else:
        n = jnp.sum(jnp.abs(xf), axis=-1, keepdims=True)
    return (xf / (n + 1e-8)).astype(x.dtype)


if __name__ == "__main__":
    key = jax.random.PRNGKey(0)
    k1, k2 = jax.random.split(key)

    # NCHW-style input (norm over W=16): exercises the lane-folded path.
    x_small = jax.random.normal(k1, (2, 4, 16, 16), dtype=jnp.float32)
    # Lane-aligned last dim: exercises the plain row-sum path.
    x_wide = jax.random.normal(k2, (2, 8, 128), dtype=jnp.float32)

    ok = True
    for x in (x_small, x_wide):
        for p in (1, 2, 3):          # p=3 exercises the pass-through branch
            out = jax.block_until_ready(l12_norm(x, p=p))
            ref = _reference(x, p)
            if not jnp.allclose(out, ref, atol=1e-5, rtol=1e-5):
                ok = False
                print("mismatch: shape", x.shape, "p", p,
                      "max err", float(jnp.max(jnp.abs(out - ref))))

    if ok:
        print("KERNEL_OK")
    else:
        print("MISMATCH")
</pallas_src>

<mosaic_0001>
module attributes {stable_mosaic.version = 11 : i64} {
  func.func @_l12norm_folded_kernel(%arg0: i32, %arg1: memref<16x128xf32, #tpu.memory_space<vmem>>, %arg2: memref<16x128xf32, #tpu.memory_space<vmem>>) attributes {dimension_semantics = [#tpu.dimension_semantics<parallel>], iteration_bounds = array<i64: 1>, scalar_prefetch = 0 : i64, scratch_operands = 0 : i64, tpu.core_type = #tpu.core_type<tc>, window_params = [{transform_indices = @transform_0, window_bounds = array<i64: 16, 128>}, {transform_indices = @transform_1, window_bounds = array<i64: 16, 128>}]} {
    %c0 = arith.constant 0 : index
    %c0_0 = arith.constant 0 : index
    %0 = vector.load %arg1[%c0, %c0_0] : memref<16x128xf32, #tpu.memory_space<vmem>>, vector<16x128xf32>
    %1 = math.absf %0 : vector<16x128xf32>
    %2 = tpu.iota {dimensions = array<i32: 1>} : vector<16x128xi32>
    %c1_i32 = arith.constant 1 : i32
    %3 = tpu.dynamic_rotate %1 by %c1_i32 dim 1 : vector<16x128xf32>, i32 -> vector<16x128xf32>
    %c127_i32 = arith.constant 127 : i32
    %4 = tpu.dynamic_rotate %1 by %c127_i32 dim 1 : vector<16x128xf32>, i32 -> vector<16x128xf32>
    %c1_i32_1 = arith.constant 1 : i32
    %5 = tpu.dynamic_rotate %2 by %c1_i32_1 dim 1 : vector<16x128xi32>, i32 -> vector<16x128xi32>
    %c1_i32_2 = arith.constant 1 : i32
    %6 = vector.broadcast %c1_i32_2 : i32 to vector<16x128xi32>
    %7 = arith.xori %2, %6 : vector<16x128xi32>
    %8 = arith.cmpi eq, %5, %7 : vector<16x128xi32>
    %9 = arith.select %8, %3, %4 : vector<16x128xi1>, vector<16x128xf32>
    %10 = arith.addf %1, %9 : vector<16x128xf32>
    %c2_i32 = arith.constant 2 : i32
    %11 = tpu.dynamic_rotate %10 by %c2_i32 dim 1 : vector<16x128xf32>, i32 -> vector<16x128xf32>
    %c126_i32 = arith.constant 126 : i32
    %12 = tpu.dynamic_rotate %10 by %c126_i32 dim 1 : vector<16x128xf32>, i32 -> vector<16x128xf32>
    %c2_i32_3 = arith.constant 2 : i32
    %13 = tpu.dynamic_rotate %2 by %c2_i32_3 dim 1 : vector<16x128xi32>, i32 -> vector<16x128xi32>
    %c2_i32_4 = arith.constant 2 : i32
    %14 = vector.broadcast %c2_i32_4 : i32 to vector<16x128xi32>
    %15 = arith.xori %2, %14 : vector<16x128xi32>
    %16 = arith.cmpi eq, %13, %15 : vector<16x128xi32>
    %17 = arith.select %16, %11, %12 : vector<16x128xi1>, vector<16x128xf32>
    %18 = arith.addf %10, %17 : vector<16x128xf32>
    %c4_i32 = arith.constant 4 : i32
    %19 = tpu.dynamic_rotate %18 by %c4_i32 dim 1 : vector<16x128xf32>, i32 -> vector<16x128xf32>
    %c124_i32 = arith.constant 124 : i32
    %20 = tpu.dynamic_rotate %18 by %c124_i32 dim 1 : vector<16x128xf32>, i32 -> vector<16x128xf32>
    %c4_i32_5 = arith.constant 4 : i32
    %21 = tpu.dynamic_rotate %2 by %c4_i32_5 dim 1 : vector<16x128xi32>, i32 -> vector<16x128xi32>
    %c4_i32_6 = arith.constant 4 : i32
    %22 = vector.broadcast %c4_i32_6 : i32 to vector<16x128xi32>
    %23 = arith.xori %2, %22 : vector<16x128xi32>
    %24 = arith.cmpi eq, %21, %23 : vector<16x128xi32>
    %25 = arith.select %24, %19, %20 : vector<16x128xi1>, vector<16x128xf32>
    %26 = arith.addf %18, %25 : vector<16x128xf32>
    %c8_i32 = arith.constant 8 : i32
    %27 = tpu.dynamic_rotate %26 by %c8_i32 dim 1 : vector<16x128xf32>, i32 -> vector<16x128xf32>
    %c120_i32 = arith.constant 120 : i32
    %28 = tpu.dynamic_rotate %26 by %c120_i32 dim 1 : vector<16x128xf32>, i32 -> vector<16x128xf32>
    %c8_i32_7 = arith.constant 8 : i32
    %29 = tpu.dynamic_rotate %2 by %c8_i32_7 dim 1 : vector<16x128xi32>, i32 -> vector<16x128xi32>
    %c8_i32_8 = arith.constant 8 : i32
    %30 = vector.broadcast %c8_i32_8 : i32 to vector<16x128xi32>
    %31 = arith.xori %2, %30 : vector<16x128xi32>
    %32 = arith.cmpi eq, %29, %31 : vector<16x128xi32>
    %33 = arith.select %32, %27, %28 : vector<16x128xi1>, vector<16x128xf32>
    %34 = arith.addf %26, %33 : vector<16x128xf32>
    %cst = arith.constant 9.99999993E-9 : f32
    %35 = vector.broadcast %cst : f32 to vector<16x128xf32>
    %36 = arith.addf %34, %35 : vector<16x128xf32>
    %37 = tpu.reciprocal %36 : vector<16x128xf32> -> vector<16x128xf32>
    %38 = arith.mulf %0, %37 : vector<16x128xf32>
    %c0_9 = arith.constant 0 : index
    %c0_10 = arith.constant 0 : index
    %39 = vector.load %arg2[%c0_9, %c0_10] : memref<16x128xf32, #tpu.memory_space<vmem>>, vector<16x128xf32>
    tpu.vector_store %arg2[%c0_9, %c0_10], %38 {strides = array<i32>} : memref<16x128xf32, #tpu.memory_space<vmem>>, vector<16x128xf32>,
    return
  }
  func.func @transform_0(%arg0: i32) -> (i32, i32) {
    %c0_i32 = arith.constant 0 : i32
    %c0_i32_0 = arith.constant 0 : i32
    return %arg0, %c0_i32 : i32, i32
  }
  func.func @transform_1(%arg0: i32) -> (i32, i32) {
    %c0_i32 = arith.constant 0 : i32
    %c0_i32_0 = arith.constant 0 : i32
    return %arg0, %c0_i32 : i32, i32
  }
}

</mosaic_0001>

<llo_original>
// kernel: tpu_custom_call.1
$region0: #{tpu_custom_call.1}
  #allocation0 [shape = 'u32[]', space=smem, size = 0x4, offset = 0x4, fixed_abs, tag = 'smem constant byte address 0x4 - core index']
  #allocation1 [shape = 'u32[144,128]{1,0:T(1,128)}', space=vmem, size = 0x12000, scoped, tag = 'internal scratch']
  %s0 = inlined_call_operand.hbm [shape: f32[16,128], index: 0, kind: input, shape index: {}]
  %s1 = inlined_call_operand.hbm [shape: f32[16,128], index: 1, kind: output, shape index: {}]
  %s2 = sld [smem:[#allocation0]]
  $region18: #{tpu_custom_call.1} parent=0
    _
  %s4 = ssub.s32 1, %s2
  %s5 = scalar_select 0, %s4, %s2
  $region1: #{tpu_custom_call.1} parent=0
    #allocation2 [shape = 'u8[8192]{0}', space=vmem, size = 0x2000, scoped, tag = 'input window, operand 0, single buffered']
    #allocation3 [shape = 's32[1]{0}', space=sflag, size = 0x4, scoped, tag = 'scoped memory for tpu_custom_call.1']
    #allocation4 [shape = 's32[1]{0}', space=sflag, size = 0x4, scoped, tag = 'scoped memory for tpu_custom_call.1']
    #allocation5 [shape = 'u8[8192]{0}', space=vmem, size = 0x2000, scoped, tag = 'output window, operand 0, single buffered']
    %6 = vsyncpa [#allocation3], 0
    %7 = vsyncpa [#allocation4], 0
    // Predicated region
    $region2: #{tpu_custom_call.1} parent=1 // pred_check
      _
    $region3: #{tpu_custom_call.1} parent=1 // pred_check_branch
      %9 = sbr.rel (0) target = $region5
    $region4: #{tpu_custom_call.1} parent=1 // pred_region
      %s11 = ssub.s32 256, 256
      %12 = vsyncadd [#allocation3], %s11
      %s13 = sshll.u32 [#allocation2], 4
      %s14 = int_to_ptr.vmem [resolvable:$true] %s13
      %19 = dma.hbm_to_vmem [thread:$0]  %s0, 256, %s14, [#allocation3], 128, 128, 8
    $region5: #{tpu_custom_call.1} parent=1 // pred_fallthru
      _
    // Predicated region
    $region6: #{tpu_custom_call.1} parent=1 // pred_check
      _
    $region7: #{tpu_custom_call.1} parent=1 // pred_check_branch
      %21 = sbr.rel (0) target = $region9
    $region8: #{tpu_custom_call.1} parent=1 // pred_region
      %22 = dma.done [#allocation3], 256
    $region9: #{tpu_custom_call.1} parent=1 // pred_fallthru
      _
    %v23 = vld [vmem:[#allocation2] sm:$0xff]
    %v24 = vld [vmem:[#allocation2 + $0x8] sm:$0xff]
    %v25 = vand.u32 2147483647, %v23
    %v26 = vand.u32 2147483647, %v24
    %v27 = vlaneseq
    %v28 = vand.u32 %v27, 127
    %29 = vrot.lane.b32.xlu0 %v25, 1
    %v30 = vpop.permute.xlu0 %29
    %31 = vrot.lane.b32.xlu0 %v26, 1
    %v32 = vpop.permute.xlu0 %31
    %33 = vrot.lane.b32.xlu0 %v25, 127
    %v34 = vpop.permute.xlu0 %33
    %35 = vrot.lane.b32.xlu0 %v26, 127
    %v36 = vpop.permute.xlu0 %35
    %37 = vrot.lane.b32.xlu0 %v28, 1
    %v38 = vpop.permute.xlu0 %37
    %v39 = vxor.u32 %v28, 1
    %vm40 = vcmp.eq.s32.totalorder %v38, %v39
    %v41 = vsel %vm40, %v30, %v34
    %v42 = vsel %vm40, %v32, %v36
    %v43 = vadd.f32 %v25, %v41
    %v44 = vadd.f32 %v26, %v42
    %45 = vrot.lane.b32.xlu0 %v43, 2
    %v46 = vpop.permute.xlu0 %45
    %47 = vrot.lane.b32.xlu0 %v44, 2
    %v48 = vpop.permute.xlu0 %47
    %49 = vrot.lane.b32.xlu0 %v43, 126
    %v50 = vpop.permute.xlu0 %49
    %51 = vrot.lane.b32.xlu0 %v44, 126
    %v52 = vpop.permute.xlu0 %51
    %53 = vrot.lane.b32.xlu0 %v28, 2
    %v54 = vpop.permute.xlu0 %53
    %v55 = vxor.u32 %v28, 2
    %vm56 = vcmp.eq.s32.totalorder %v54, %v55
    %v57 = vsel %vm56, %v46, %v50
    %v58 = vsel %vm56, %v48, %v52
    %v59 = vadd.f32 %v43, %v57
    %v60 = vadd.f32 %v44, %v58
    %61 = vrot.lane.b32.xlu0 %v59, 4
    %v62 = vpop.permute.xlu0 %61
    %63 = vrot.lane.b32.xlu0 %v60, 4
    %v64 = vpop.permute.xlu0 %63
    %65 = vrot.lane.b32.xlu0 %v59, 124
    %v66 = vpop.permute.xlu0 %65
    %67 = vrot.lane.b32.xlu0 %v60, 124
    %v68 = vpop.permute.xlu0 %67
    %69 = vrot.lane.b32.xlu0 %v28, 4
    %v70 = vpop.permute.xlu0 %69
    %v71 = vxor.u32 %v28, 4
    %vm72 = vcmp.eq.s32.totalorder %v70, %v71
    %v73 = vsel %vm72, %v62, %v66
    %v74 = vsel %vm72, %v64, %v68
    %v75 = vadd.f32 %v59, %v73
    %v76 = vadd.f32 %v60, %v74
    %77 = vrot.lane.b32.xlu0 %v75, 8
    %v78 = vpop.permute.xlu0 %77
    %79 = vrot.lane.b32.xlu0 %v76, 8
    %v80 = vpop.permute.xlu0 %79
    %81 = vrot.lane.b32.xlu0 %v75, 120
    %v82 = vpop.permute.xlu0 %81
    %83 = vrot.lane.b32.xlu0 %v76, 120
    %v84 = vpop.permute.xlu0 %83
    %85 = vrot.lane.b32.xlu0 %v28, 8
    %v86 = vpop.permute.xlu0 %85
    %v87 = vxor.u32 %v28, 8
    %vm88 = vcmp.eq.s32.totalorder %v86, %v87
    %v89 = vsel %vm88, %v78, %v82
    %v90 = vsel %vm88, %v80, %v84
    %v91 = vadd.f32 %v75, %v89
    %v92 = vadd.f32 %v76, %v90
    %v93 = vadd.f32 %v91, 1e-08
    %v94 = vadd.f32 %v92, 1e-08
    %v95 = vrcp.pop %v93
    %v96 = vrcp.pop %v94
    %v97 = vmul.f32 %v23, %v95
    %v98 = vmul.f32 %v24, %v96
    %99 = vst [vmem:[#allocation5] sm:$0xff] %v97
    %100 = vst [vmem:[#allocation5 + $0x8] sm:$0xff] %v98
    // Predicated region
    $region10: #{tpu_custom_call.1} parent=1 // pred_check
      _
    $region11: #{tpu_custom_call.1} parent=1 // pred_check_branch
      %102 = sbr.rel (0) target = $region13
    $region12: #{tpu_custom_call.1} parent=1 // pred_region
      %s104 = ssub.s32 256, 256
      %105 = vsyncadd [#allocation4], %s104
      %s106 = sshll.u32 [#allocation5], 4
      %s107 = int_to_ptr.vmem [resolvable:$true] %s106
      %112 = dma.vmem_to_hbm [thread:$0]  %s107, 256, %s1, [#allocation4], 128, 128, 8
    $region13: #{tpu_custom_call.1} parent=1 // pred_fallthru
      _
    // Predicated region
    $region14: #{tpu_custom_call.1} parent=1 // pred_check
      _
    $region15: #{tpu_custom_call.1} parent=1 // pred_check_branch
      %114 = sbr.rel (0) target = $region17
    $region16: #{tpu_custom_call.1} parent=1 // pred_region
      %115 = dma.done [#allocation4], 256
    $region17: #{tpu_custom_call.1} parent=1 // pred_fallthru
      _
    %116 = vsyncpa [#allocation3], 1
    %117 = vsyncpa [#allocation4], 1

</llo_original>
